<compile_context>
chip_gen: v7x
topology: tpu7x:2x2x1
jax: 0.10.0
libtpu: 0.0.40
codegen_flags: <defaults>
</compile_context>

<pallas_src>
import functools

import jax
import jax.numpy as jnp
from jax.experimental import pallas as pl
from jax.experimental.pallas import tpu as pltpu


def _round_up(n: int, m: int) -> int:
    return ((n + m - 1) // m) * m


def _make_net1_kernel(depth: int, compute_dtype):
    def kernel(x_ref, w_ref, b_ref, o_ref):
        # x_ref : (TILE_B, P_in)            VMEM, fp32
        # w_ref : (depth, P_in, P_out)      VMEM, compute_dtype (bf16), pre-transposed
        # b_ref : (depth, 1, P_out)         VMEM, fp32
        # o_ref : (TILE_B, P_out)           VMEM, fp32
        h = x_ref[...].astype(jnp.float32)
        biases = b_ref[...]  # load once; avoid per-layer re-broadcast
        for i in range(depth):  # depth is static -> unrolled chain of MXU matmuls
            h = jnp.dot(
                h.astype(compute_dtype),      # bf16 operands -> full MXU rate
                w_ref[i],                     # already compute_dtype
                preferred_element_type=jnp.float32,  # fp32 accumulation
            ) + biases[i]                     # fp32 epilogue (VPU-safe on v5e)
        o_ref[...] = h.astype(o_ref.dtype)

    return kernel


@functools.partial(jax.jit, static_argnames=("compute_dtype", "tile_b"))
def net1_forward(x, w_stack, b_stack, *, compute_dtype=jnp.bfloat16, tile_b=None):
    """Chained linear layers: x -> L_0 -> L_1 -> ... -> L_{depth-1}."""
    B, in_dim = x.shape
    depth, w_in, out_dim = w_stack.shape
    assert w_in == in_dim
    if depth > 1:
        # Chaining layers requires matching dims (intent of the original module).
        assert in_dim == out_dim

    # Lane-dense feature dims (multiples of 128) and sublane-aligned batch tiles.
    p_in = _round_up(in_dim, 128)
    p_out = _round_up(out_dim, 128)
    if tile_b is None:
        tile_b = min(512, _round_up(B, 8))
    b_pad = _round_up(B, tile_b)

    # Zero-pad in the wrapper; padded lanes stay exactly zero through every
    # layer (zero weight rows/cols, zero bias), so slicing at the end is exact.
    x_p = jnp.zeros((b_pad, p_in), x.dtype).at[:B, :in_dim].set(x)
    w_p = (
        jnp.zeros((depth, p_in, p_out), compute_dtype)
        .at[:, :in_dim, :out_dim]
        .set(w_stack.astype(compute_dtype))
    )
    b_p = (
        jnp.zeros((depth, 1, p_out), jnp.float32)
        .at[:, :, :out_dim]
        .set(b_stack.astype(jnp.float32))
    )

    # VMEM budget: resident weights/bias (x2 safety for pipeline buffers),
    # double-buffered x/out tiles, fp32 intermediate activations.
    weight_bytes = depth * p_in * p_out * jnp.dtype(compute_dtype).itemsize
    bias_bytes = depth * p_out * 4
    io_bytes = 2 * tile_b * (p_in + p_out) * x.dtype.itemsize
    act_bytes = 2 * tile_b * max(p_in, p_out) * 4
    needed = 2 * (weight_bytes + bias_bytes) + io_bytes + act_bytes
    vmem_limit = int(min(96 * 2**20, max(32 * 2**20, needed + (1 << 20))))

    cost = pl.CostEstimate(
        flops=2 * b_pad * p_in * p_out * depth,
        transcendentals=0,
        bytes_accessed=(
            x_p.size * x_p.dtype.itemsize
            + w_p.size * w_p.dtype.itemsize
            + b_p.size * b_p.dtype.itemsize
            + b_pad * p_out * x.dtype.itemsize
        ),
    )

    kernel = _make_net1_kernel(depth, compute_dtype)
    out_pad = pl.pallas_call(
        kernel,
        out_shape=jax.ShapeDtypeStruct((b_pad, p_out), x.dtype),
        grid=(b_pad // tile_b,),
        in_specs=[
            pl.BlockSpec((tile_b, p_in), lambda i: (i, 0)),
            # Constant index_map -> weights/bias stay VMEM-resident across tiles.
            pl.BlockSpec((depth, p_in, p_out), lambda i: (0, 0, 0)),
            pl.BlockSpec((depth, 1, p_out), lambda i: (0, 0, 0)),
        ],
        out_specs=pl.BlockSpec((tile_b, p_out), lambda i: (i, 0)),
        compiler_params=pltpu.CompilerParams(
            dimension_semantics=("parallel",),
            vmem_limit_bytes=vmem_limit,
        ),
        cost_estimate=cost,
    )(x_p, w_p, b_p)

    return out_pad[:B, :out_dim]


def init_params(key, in_dim, out_dim, depth):
    """Deterministic PyTorch-Linear-style init: U(-1/sqrt(in_dim), 1/sqrt(in_dim))."""
    bound = 1.0 / jnp.sqrt(jnp.float32(in_dim))
    ws, bs = [], []
    for _ in range(depth):
        kw, kb, key = jax.random.split(key, 3)
        # PyTorch stores weight as (out_dim, in_dim); transpose for x @ W^T.
        w = jax.random.uniform(kw, (out_dim, in_dim), jnp.float32, -bound, bound)
        b = jax.random.uniform(kb, (out_dim,), jnp.float32, -bound, bound)
        ws.append(w.T)                    # (in_dim, out_dim)
        bs.append(b.reshape(1, out_dim))  # (1, out_dim)
    return jnp.stack(ws, axis=0), jnp.stack(bs, axis=0)


if __name__ == "__main__":
    key = jax.random.PRNGKey(0)
    batch, in_dim, out_dim, depth = 8, 32, 32, 3  # in_dim == out_dim so chaining is valid

    kx, kp = jax.random.split(key)
    x = jax.random.normal(kx, (batch, in_dim), jnp.float32)
    w_stack, b_stack = init_params(kp, in_dim, out_dim, depth)

    out = net1_forward(x, w_stack, b_stack)
    out = jax.block_until_ready(out)
    assert out.shape == (batch, out_dim)

    # Reference 1: mirrors the kernel math exactly (bf16 operands, fp32 accumulate).
    ref_mixed = x.astype(jnp.float32)
    for i in range(depth):
        ref_mixed = (
            jnp.dot(
                ref_mixed.astype(jnp.bfloat16),
                w_stack[i].astype(jnp.bfloat16),
                preferred_element_type=jnp.float32,
            )
            + b_stack[i]
        )
    assert jnp.allclose(out, ref_mixed, atol=2e-3, rtol=2e-3)

    # Reference 2: the literal fp32 nn.Linear chain (looser, bf16 operand rounding).
    ref_fp32 = x
    for i in range(depth):
        ref_fp32 = ref_fp32 @ w_stack[i] + b_stack[i]
    assert jnp.allclose(out, ref_fp32, atol=5e-2, rtol=5e-2)

    print("KERNEL_OK")
</pallas_src>

<mosaic_0001>
module attributes {stable_mosaic.version = 11 : i64} {
  func.func @kernel(%arg0: i32, %arg1: memref<8x128xf32, #tpu.memory_space<vmem>>, %arg2: memref<3x128x128xbf16, #tpu.memory_space<vmem>>, %arg3: memref<3x1x128xf32, #tpu.memory_space<vmem>>, %arg4: memref<8x128xf32, #tpu.memory_space<vmem>>) attributes {dimension_semantics = [#tpu.dimension_semantics<parallel>], iteration_bounds = array<i64: 1>, scalar_prefetch = 0 : i64, scratch_operands = 0 : i64, tpu.core_type = #tpu.core_type<tc>, window_params = [{transform_indices = @transform_0, window_bounds = array<i64: 8, 128>}, {pipeline_mode = #tpu.pipeline_mode<synchronous>, transform_indices = @transform_1, window_bounds = array<i64: 3, 128, 128>}, {pipeline_mode = #tpu.pipeline_mode<synchronous>, transform_indices = @transform_2, window_bounds = array<i64: 3, 1, 128>}, {transform_indices = @transform_3, window_bounds = array<i64: 8, 128>}]} {
    %c0 = arith.constant 0 : index
    %c0_0 = arith.constant 0 : index
    %0 = vector.load %arg1[%c0, %c0_0] : memref<8x128xf32, #tpu.memory_space<vmem>>, vector<8x128xf32>
    %c0_1 = arith.constant 0 : index
    %c0_2 = arith.constant 0 : index
    %c0_3 = arith.constant 0 : index
    %1 = vector.load %arg3[%c0_1, %c0_2, %c0_3] : memref<3x1x128xf32, #tpu.memory_space<vmem>>, vector<3x1x128xf32>
    %2 = arith.truncf %0 : vector<8x128xf32> to vector<8x128xbf16>
    %c0_4 = arith.constant 0 : index
    %c0_5 = arith.constant 0 : index
    %c0_6 = arith.constant 0 : index
    %3 = vector.load %arg2[%c0_4, %c0_5, %c0_6] : memref<3x128x128xbf16, #tpu.memory_space<vmem>>, vector<1x128x128xbf16>
    %4 = vector.shape_cast %3 : vector<1x128x128xbf16> to vector<128x128xbf16>
    %cst = arith.constant dense<0.000000e+00> : vector<8x128xf32>
    %5 = tpu.matmul %2, %4, %cst {dimension_numbers = #tpu.dot_dimension_numbers<[1], [0], [0], [1], [0, 0, 1, 1], [], []>} : vector<8x128xbf16>, vector<128x128xbf16>, vector<8x128xf32> -> vector<8x128xf32>
    %6 = vector.extract_strided_slice %1 {offsets = [0, 0, 0], sizes = [1, 1, 128], strides = [1, 1, 1]} : vector<3x1x128xf32> to vector<1x1x128xf32>
    %7 = vector.shape_cast %6 : vector<1x1x128xf32> to vector<1x128xf32>
    %8 = vector.broadcast %7 : vector<1x128xf32> to vector<8x128xf32>
    %9 = arith.addf %5, %8 : vector<8x128xf32>
    %10 = arith.truncf %9 : vector<8x128xf32> to vector<8x128xbf16>
    %c1 = arith.constant 1 : index
    %c0_7 = arith.constant 0 : index
    %c0_8 = arith.constant 0 : index
    %11 = vector.load %arg2[%c1, %c0_7, %c0_8] : memref<3x128x128xbf16, #tpu.memory_space<vmem>>, vector<1x128x128xbf16>
    %12 = vector.shape_cast %11 : vector<1x128x128xbf16> to vector<128x128xbf16>
    %cst_9 = arith.constant dense<0.000000e+00> : vector<8x128xf32>
    %13 = tpu.matmul %10, %12, %cst_9 {dimension_numbers = #tpu.dot_dimension_numbers<[1], [0], [0], [1], [0, 0, 1, 1], [], []>} : vector<8x128xbf16>, vector<128x128xbf16>, vector<8x128xf32> -> vector<8x128xf32>
    %14 = vector.extract_strided_slice %1 {offsets = [1, 0, 0], sizes = [1, 1, 128], strides = [1, 1, 1]} : vector<3x1x128xf32> to vector<1x1x128xf32>
    %15 = vector.shape_cast %14 : vector<1x1x128xf32> to vector<1x128xf32>
    %16 = vector.broadcast %15 : vector<1x128xf32> to vector<8x128xf32>
    %17 = arith.addf %13, %16 : vector<8x128xf32>
    %18 = arith.truncf %17 : vector<8x128xf32> to vector<8x128xbf16>
    %c2 = arith.constant 2 : index
    %c0_10 = arith.constant 0 : index
    %c0_11 = arith.constant 0 : index
    %19 = vector.load %arg2[%c2, %c0_10, %c0_11] : memref<3x128x128xbf16, #tpu.memory_space<vmem>>, vector<1x128x128xbf16>
    %20 = vector.shape_cast %19 : vector<1x128x128xbf16> to vector<128x128xbf16>
    %cst_12 = arith.constant dense<0.000000e+00> : vector<8x128xf32>
    %21 = tpu.matmul %18, %20, %cst_12 {dimension_numbers = #tpu.dot_dimension_numbers<[1], [0], [0], [1], [0, 0, 1, 1], [], []>} : vector<8x128xbf16>, vector<128x128xbf16>, vector<8x128xf32> -> vector<8x128xf32>
    %22 = vector.extract_strided_slice %1 {offsets = [2, 0, 0], sizes = [1, 1, 128], strides = [1, 1, 1]} : vector<3x1x128xf32> to vector<1x1x128xf32>
    %23 = vector.shape_cast %22 : vector<1x1x128xf32> to vector<1x128xf32>
    %24 = vector.broadcast %23 : vector<1x128xf32> to vector<8x128xf32>
    %25 = arith.addf %21, %24 : vector<8x128xf32>
    %c0_13 = arith.constant 0 : index
    %c0_14 = arith.constant 0 : index
    %26 = vector.load %arg4[%c0_13, %c0_14] : memref<8x128xf32, #tpu.memory_space<vmem>>, vector<8x128xf32>
    tpu.vector_store %arg4[%c0_13, %c0_14], %25 {strides = array<i32>} : memref<8x128xf32, #tpu.memory_space<vmem>>, vector<8x128xf32>,
    return
  }
  func.func @transform_0(%arg0: i32) -> (i32, i32) {
    %c0_i32 = arith.constant 0 : i32
    %c0_i32_0 = arith.constant 0 : i32
    return %arg0, %c0_i32 : i32, i32
  }
  func.func @transform_1(%arg0: i32) -> (i32, i32, i32) {
    %c0_i32 = arith.constant 0 : i32
    %c0_i32_0 = arith.constant 0 : i32
    %c0_i32_1 = arith.constant 0 : i32
    %c0_i32_2 = arith.constant 0 : i32
    return %c0_i32, %c0_i32_0, %c0_i32_1 : i32, i32, i32
  }
  func.func @transform_2(%arg0: i32) -> (i32, i32, i32) {
    %c0_i32 = arith.constant 0 : i32
    %c0_i32_0 = arith.constant 0 : i32
    %c0_i32_1 = arith.constant 0 : i32
    %c0_i32_2 = arith.constant 0 : i32
    return %c0_i32, %c0_i32_0, %c0_i32_1 : i32, i32, i32
  }
  func.func @transform_3(%arg0: i32) -> (i32, i32) {
    %c0_i32 = arith.constant 0 : i32
    %c0_i32_0 = arith.constant 0 : i32
    return %arg0, %c0_i32 : i32, i32
  }
}

</mosaic_0001>

<llo_original>
// kernel: net1_forward.1
$region0: #{net1_forward.1}
  #allocation0 [shape = 'u32[]', space=smem, size = 0x4, offset = 0x4, fixed_abs, tag = 'smem constant byte address 0x4 - core index']
  #allocation1 [shape = 'u32[144,128]{1,0:T(1,128)}', space=vmem, size = 0x12000, scoped, tag = 'internal scratch']
  %s0 = inlined_call_operand.vmem [shape: f32[8,128], index: 0, kind: input, shape index: {}]
  %s1 = inlined_call_operand.vmem [shape: bf16[3,128,128], index: 1, kind: input, shape index: {}]
  %s2 = inlined_call_operand.vmem [shape: f32[3,1,128], index: 2, kind: input, shape index: {}]
  %s3 = inlined_call_operand.hbm [shape: f32[8,128], index: 3, kind: output, shape index: {}]
  %s4 = sld [smem:[#allocation0]]
  $region22: #{net1_forward.1} parent=0
    _
  %s6 = ssub.s32 1, %s4
  %s7 = scalar_select 0, %s6, %s4
  $region1: #{net1_forward.1} parent=0
    #allocation2 [shape = 'u8[4096]{0}', space=vmem, size = 0x1000, scoped, tag = 'output window, operand 0, single buffered']
    #allocation3 [shape = 's32[1]{0}', space=sflag, size = 0x4, scoped, tag = 'scoped memory for net1_forward.1']
    %8 = vsyncpa [#allocation3], 0
    // Predicated region
    $region2: #{net1_forward.1} parent=1 // pred_check
      _
    $region3: #{net1_forward.1} parent=1 // pred_check_branch
      %10 = sbr.rel (0) target = $region5
    $region4: #{net1_forward.1} parent=1 // pred_region
      _
    $region5: #{net1_forward.1} parent=1 // pred_fallthru
      _
    // Predicated region
    $region6: #{net1_forward.1} parent=1 // pred_check
      _
    $region7: #{net1_forward.1} parent=1 // pred_check_branch
      %12 = sbr.rel (0) target = $region9
    $region8: #{net1_forward.1} parent=1 // pred_region
      _
    $region9: #{net1_forward.1} parent=1 // pred_fallthru
      _
    // Predicated region
    $region10: #{net1_forward.1} parent=1 // pred_check
      _
    $region11: #{net1_forward.1} parent=1 // pred_check_branch
      %14 = sbr.rel (0) target = $region13
    $region12: #{net1_forward.1} parent=1 // pred_region
      _
    $region13: #{net1_forward.1} parent=1 // pred_fallthru
      _
    %v16 = vld [vmem:[%s0] sm:$0xff]
    %v17 = vld [vmem:[%s2] sm:$0x1]
    %v18 = vld [vmem:[%s2 + $0x1] sm:$0x1]
    %v19 = vld [vmem:[%s2 + $0x2] sm:$0x1]
    %v20 = vpack.c.bf16 %v16, %v16
    %v21 = vld [vmem:[%s1] sm:$0xf]
    %v22 = vld [vmem:[%s1 + $0x4] sm:$0xf]
    %v23 = vld [vmem:[%s1 + $0x8] sm:$0xf]
    %v24 = vld [vmem:[%s1 + $0xc] sm:$0xf]
    %v25 = vld [vmem:[%s1 + $0x10] sm:$0xf]
    %v26 = vld [vmem:[%s1 + $0x14] sm:$0xf]
    %v27 = vld [vmem:[%s1 + $0x18] sm:$0xf]
    %v28 = vld [vmem:[%s1 + $0x1c] sm:$0xf]
    %v29 = vld [vmem:[%s1 + $0x20] sm:$0xf]
    %v30 = vld [vmem:[%s1 + $0x24] sm:$0xf]
    %v31 = vld [vmem:[%s1 + $0x28] sm:$0xf]
    %v32 = vld [vmem:[%s1 + $0x2c] sm:$0xf]
    %v33 = vld [vmem:[%s1 + $0x30] sm:$0xf]
    %v34 = vld [vmem:[%s1 + $0x34] sm:$0xf]
    %v35 = vld [vmem:[%s1 + $0x38] sm:$0xf]
    %v36 = vld [vmem:[%s1 + $0x3c] sm:$0xf]
    %v38 = vlaneseq
    %v39 = vshrl.u32 %v38, 7
    %v40 = vsub.s32 0, %v39
    %v41 = vrot.slane %v17, %v40
    %v59 = vunpack.c.l.b16 %v21
    %v60 = vunpack.c.l.b16 %v22
    %v61 = vunpack.c.l.b16 %v23
    %v62 = vunpack.c.l.b16 %v24
    %v63 = vunpack.c.l.b16 %v25
    %v64 = vunpack.c.l.b16 %v26
    %v65 = vunpack.c.l.b16 %v27
    %v66 = vunpack.c.l.b16 %v28
    %v67 = vunpack.c.l.b16 %v29
    %v68 = vunpack.c.l.b16 %v30
    %v69 = vunpack.c.l.b16 %v31
    %v70 = vunpack.c.l.b16 %v32
    %v71 = vunpack.c.l.b16 %v33
    %v72 = vunpack.c.l.b16 %v34
    %v73 = vunpack.c.l.b16 %v35
    %v74 = vunpack.c.l.b16 %v36
    %v75 = vpack.c.b16 %v60, %v59
    %v76 = vpack.c.b16 %v62, %v61
    %v77 = vpack.c.b16 %v64, %v63
    %v78 = vpack.c.b16 %v66, %v65
    %v79 = vpack.c.b16 %v68, %v67
    %v80 = vpack.c.b16 %v70, %v69
    %v81 = vpack.c.b16 %v72, %v71
    %v82 = vpack.c.b16 %v74, %v73
    %91 = vmatprep.subr.bf16.mxu0 0
    %92 = vmatpush1.bf16.msra.mxu0 %v75
    %93 = vmatprep.subr.bf16.mxu0 0
    %94 = vmatpush1.bf16.msra.mxu0 %v76
    %95 = vmatprep.subr.bf16.mxu0 0
    %96 = vmatpush1.bf16.msra.mxu0 %v77
    %97 = vmatprep.subr.bf16.mxu0 0
    %98 = vmatpush1.bf16.msra.mxu0 %v78
    %99 = vmatprep.subr.bf16.mxu0 0
    %100 = vmatpush1.bf16.msra.mxu0 %v79
    %101 = vmatprep.subr.bf16.mxu0 0
    %102 = vmatpush1.bf16.msra.mxu0 %v80
    %103 = vmatprep.subr.bf16.mxu0 0
    %104 = vmatpush1.bf16.msra.mxu0 %v81
    %105 = vmatprep.subr.bf16.mxu0 0
    %106 = vmatpush1.bf16.msra.mxu0 %v82
    %107 = vmatprep.subr.bf16.mxu0 0
    %108 = vmatpush1.bf16.msra.mxu0 0
    %109 = vmatprep.subr.bf16.mxu0 0
    %110 = vmatpush1.bf16.msra.mxu0 0
    %111 = vmatprep.subr.bf16.mxu0 0
    %112 = vmatpush1.bf16.msra.mxu0 0
    %113 = vmatprep.subr.bf16.mxu0 0
    %114 = vmatpush1.bf16.msra.mxu0 0
    %115 = vmatprep.subr.bf16.mxu0 0
    %116 = vmatpush1.bf16.msra.mxu0 0
    %117 = vmatprep.subr.bf16.mxu0 0
    %118 = vmatpush1.bf16.msra.mxu0 0
    %119 = vmatprep.subr.bf16.mxu0 0
    %120 = vmatpush1.bf16.msra.mxu0 0
    %121 = vmatprep.subr.bf16.mxu0 0
    %122 = vmatpush1.bf16.msra.mxu0 0
    %123 = vmatprep.mubr.bf16.mxu0 0
    %124 = vmatmul.mubr.bf16.gmra.mrb[0].mxu0 %v20
    %v125 = vpop.f32.mrb[0].mxu0
    %v126 = vadd.f32 %v41, %v125
    %v127 = vpop.f32.mrb[0].mxu0
    %v128 = vpop.f32.mrb[0].mxu0
    %v129 = vpop.f32.mrb[0].mxu0
    %130 = vdwg.mxu0
    %v131 = vpack.c.bf16 %v126, %v126
    %s132 = scalar_lea.vmem %s1, 64
    %v133 = vld [vmem:[%s132] sm:$0xf]
    %v134 = vld [vmem:[%s132 + $0x4] sm:$0xf]
    %v135 = vld [vmem:[%s132 + $0x8] sm:$0xf]
    %v136 = vld [vmem:[%s132 + $0xc] sm:$0xf]
    %v137 = vld [vmem:[%s132 + $0x10] sm:$0xf]
    %v138 = vld [vmem:[%s132 + $0x14] sm:$0xf]
    %v139 = vld [vmem:[%s132 + $0x18] sm:$0xf]
    %v140 = vld [vmem:[%s132 + $0x1c] sm:$0xf]
    %v141 = vld [vmem:[%s132 + $0x20] sm:$0xf]
    %v142 = vld [vmem:[%s132 + $0x24] sm:$0xf]
    %v143 = vld [vmem:[%s132 + $0x28] sm:$0xf]
    %v144 = vld [vmem:[%s132 + $0x2c] sm:$0xf]
    %v145 = vld [vmem:[%s132 + $0x30] sm:$0xf]
    %v146 = vld [vmem:[%s132 + $0x34] sm:$0xf]
    %v147 = vld [vmem:[%s132 + $0x38] sm:$0xf]
    %v148 = vld [vmem:[%s132 + $0x3c] sm:$0xf]
    %v150 = vlaneseq
    %v151 = vshrl.u32 %v150, 7
    %v152 = vsub.s32 0, %v151
    %v153 = vrot.slane %v18, %v152
    %v171 = vunpack.c.l.b16 %v133
    %v172 = vunpack.c.l.b16 %v134
    %v173 = vunpack.c.l.b16 %v135
    %v174 = vunpack.c.l.b16 %v136
    %v175 = vunpack.c.l.b16 %v137
    %v176 = vunpack.c.l.b16 %v138
    %v177 = vunpack.c.l.b16 %v139
    %v178 = vunpack.c.l.b16 %v140
    %v179 = vunpack.c.l.b16 %v141
    %v180 = vunpack.c.l.b16 %v142
    %v181 = vunpack.c.l.b16 %v143
    %v182 = vunpack.c.l.b16 %v144
    %v183 = vunpack.c.l.b16 %v145
    %v184 = vunpack.c.l.b16 %v146
    %v185 = vunpack.c.l.b16 %v147
    %v186 = vunpack.c.l.b16 %v148
    %v187 = vpack.c.b16 %v172, %v171
    %v188 = vpack.c.b16 %v174, %v173
    %v189 = vpack.c.b16 %v176, %v175
    %v190 = vpack.c.b16 %v178, %v177
    %v191 = vpack.c.b16 %v180, %v179
    %v192 = vpack.c.b16 %v182, %v181
    %v193 = vpack.c.b16 %v184, %v183
    %v194 = vpack.c.b16 %v186, %v185
    %203 = vmatprep.subr.bf16.mxu0 0
    %204 = vmatpush1.bf16.msra.mxu0 %v187
    %205 = vmatprep.subr.bf16.mxu0 0
    %206 = vmatpush1.bf16.msra.mxu0 %v188
    %207 = vmatprep.subr.bf16.mxu0 0
    %208 = vmatpush1.bf16.msra.mxu0 %v189
    %209 = vmatprep.subr.bf16.mxu0 0
    %210 = vmatpush1.bf16.msra.mxu0 %v190
    %211 = vmatprep.subr.bf16.mxu0 0
    %212 = vmatpush1.bf16.msra.mxu0 %v191
    %213 = vmatprep.subr.bf16.mxu0 0
    %214 = vmatpush1.bf16.msra.mxu0 %v192
    %215 = vmatprep.subr.bf16.mxu0 0
    %216 = vmatpush1.bf16.msra.mxu0 %v193
    %217 = vmatprep.subr.bf16.mxu0 0
    %218 = vmatpush1.bf16.msra.mxu0 %v194
    %219 = vmatprep.subr.bf16.mxu0 0
    %220 = vmatpush1.bf16.msra.mxu0 0
    %221 = vmatprep.subr.bf16.mxu0 0
    %222 = vmatpush1.bf16.msra.mxu0 0
    %223 = vmatprep.subr.bf16.mxu0 0
    %224 = vmatpush1.bf16.msra.mxu0 0
    %225 = vmatprep.subr.bf16.mxu0 0
    %226 = vmatpush1.bf16.msra.mxu0 0
    %227 = vmatprep.subr.bf16.mxu0 0
    %228 = vmatpush1.bf16.msra.mxu0 0
    %229 = vmatprep.subr.bf16.mxu0 0
    %230 = vmatpush1.bf16.msra.mxu0 0
    %231 = vmatprep.subr.bf16.mxu0 0
    %232 = vmatpush1.bf16.msra.mxu0 0
    %233 = vmatprep.subr.bf16.mxu0 0
    %234 = vmatpush1.bf16.msra.mxu0 0
    %235 = vmatprep.mubr.bf16.mxu0 0
    %236 = vmatmul.mubr.bf16.gmra.mrb[0].mxu0 %v131
    %v237 = vpop.f32.mrb[0].mxu0
    %v238 = vadd.f32 %v153, %v237
    %v239 = vpop.f32.mrb[0].mxu0
    %v240 = vpop.f32.mrb[0].mxu0
    %v241 = vpop.f32.mrb[0].mxu0
    %242 = vdwg.mxu0
    %v243 = vpack.c.bf16 %v238, %v238
    %s244 = scalar_lea.vmem %s1, 128
    %v245 = vld [vmem:[%s244] sm:$0xf]
    %v246 = vld [vmem:[%s244 + $0x4] sm:$0xf]
    %v247 = vld [vmem:[%s244 + $0x8] sm:$0xf]
    %v248 = vld [vmem:[%s244 + $0xc] sm:$0xf]
    %v249 = vld [vmem:[%s244 + $0x10] sm:$0xf]
    %v250 = vld [vmem:[%s244 + $0x14] sm:$0xf]
    %v251 = vld [vmem:[%s244 + $0x18] sm:$0xf]
    %v252 = vld [vmem:[%s244 + $0x1c] sm:$0xf]
    %v253 = vld [vmem:[%s244 + $0x20] sm:$0xf]
    %v254 = vld [vmem:[%s244 + $0x24] sm:$0xf]
    %v255 = vld [vmem:[%s244 + $0x28] sm:$0xf]
    %v256 = vld [vmem:[%s244 + $0x2c] sm:$0xf]
    %v257 = vld [vmem:[%s244 + $0x30] sm:$0xf]
    %v258 = vld [vmem:[%s244 + $0x34] sm:$0xf]
    %v259 = vld [vmem:[%s244 + $0x38] sm:$0xf]
    %v260 = vld [vmem:[%s244 + $0x3c] sm:$0xf]
    %v262 = vlaneseq
    %v263 = vshrl.u32 %v262, 7
    %v264 = vsub.s32 0, %v263
    %v265 = vrot.slane %v19, %v264
    %v283 = vunpack.c.l.b16 %v245
    %v284 = vunpack.c.l.b16 %v246
    %v285 = vunpack.c.l.b16 %v247
    %v286 = vunpack.c.l.b16 %v248
    %v287 = vunpack.c.l.b16 %v249
    %v288 = vunpack.c.l.b16 %v250
    %v289 = vunpack.c.l.b16 %v251
    %v290 = vunpack.c.l.b16 %v252
    %v291 = vunpack.c.l.b16 %v253
    %v292 = vunpack.c.l.b16 %v254
    %v293 = vunpack.c.l.b16 %v255
    %v294 = vunpack.c.l.b16 %v256
    %v295 = vunpack.c.l.b16 %v257
    %v296 = vunpack.c.l.b16 %v258
    %v297 = vunpack.c.l.b16 %v259
    %v298 = vunpack.c.l.b16 %v260
    %v299 = vpack.c.b16 %v284, %v283
    %v300 = vpack.c.b16 %v286, %v285
    %v301 = vpack.c.b16 %v288, %v287
    %v302 = vpack.c.b16 %v290, %v289
    %v303 = vpack.c.b16 %v292, %v291
    %v304 = vpack.c.b16 %v294, %v293
    %v305 = vpack.c.b16 %v296, %v295
    %v306 = vpack.c.b16 %v298, %v297
    %315 = vmatprep.subr.bf16.mxu0 0
    %316 = vmatpush1.bf16.msra.mxu0 %v299
    %317 = vmatprep.subr.bf16.mxu0 0
    %318 = vmatpush1.bf16.msra.mxu0 %v300
    %319 = vmatprep.subr.bf16.mxu0 0
    %320 = vmatpush1.bf16.msra.mxu0 %v301
    %321 = vmatprep.subr.bf16.mxu0 0
    %322 = vmatpush1.bf16.msra.mxu0 %v302
    %323 = vmatprep.subr.bf16.mxu0 0
    %324 = vmatpush1.bf16.msra.mxu0 %v303
    %325 = vmatprep.subr.bf16.mxu0 0
    %326 = vmatpush1.bf16.msra.mxu0 %v304
    %327 = vmatprep.subr.bf16.mxu0 0
    %328 = vmatpush1.bf16.msra.mxu0 %v305
    %329 = vmatprep.subr.bf16.mxu0 0
    %330 = vmatpush1.bf16.msra.mxu0 %v306
    %331 = vmatprep.subr.bf16.mxu0 0
    %332 = vmatpush1.bf16.msra.mxu0 0
    %333 = vmatprep.subr.bf16.mxu0 0
    %334 = vmatpush1.bf16.msra.mxu0 0
    %335 = vmatprep.subr.bf16.mxu0 0
    %336 = vmatpush1.bf16.msra.mxu0 0
    %337 = vmatprep.subr.bf16.mxu0 0
    %338 = vmatpush1.bf16.msra.mxu0 0
    %339 = vmatprep.subr.bf16.mxu0 0
    %340 = vmatpush1.bf16.msra.mxu0 0
    %341 = vmatprep.subr.bf16.mxu0 0
    %342 = vmatpush1.bf16.msra.mxu0 0
    %343 = vmatprep.subr.bf16.mxu0 0
    %344 = vmatpush1.bf16.msra.mxu0 0
    %345 = vmatprep.subr.bf16.mxu0 0
    %346 = vmatpush1.bf16.msra.mxu0 0
    %347 = vmatprep.mubr.bf16.mxu0 0
    %348 = vmatmul.mubr.bf16.gmra.mrb[0].mxu0 %v243
    %v349 = vpop.f32.mrb[0].mxu0
    %v350 = vadd.f32 %v265, %v349
    %v351 = vpop.f32.mrb[0].mxu0
    %v352 = vpop.f32.mrb[0].mxu0
    %v353 = vpop.f32.mrb[0].mxu0
    %354 = vdwg.mxu0
    %355 = vst [vmem:[#allocation2] sm:$0xff] %v350
    // Predicated region
    $region14: #{net1_forward.1} parent=1 // pred_check
      _
    $region15: #{net1_forward.1} parent=1 // pred_check_branch
      %357 = sbr.rel (0) target = $region17
    $region16: #{net1_forward.1} parent=1 // pred_region
      %s359 = ssub.s32 128, 128
      %360 = vsyncadd [#allocation3], %s359
      %s362 = sshll.u32 [#allocation2], 4
      %s363 = int_to_ptr.vmem [resolvable:$true] %s362
      %365 = dma.vmem_to_hbm [thread:$0]  %s363, 128, %s3, [#allocation3]
    $region17: #{net1_forward.1} parent=1 // pred_fallthru
      _
    // Predicated region
    $region18: #{net1_forward.1} parent=1 // pred_check
      _
    $region19: #{net1_forward.1} parent=1 // pred_check_branch
      %367 = sbr.rel (0) target = $region21
    $region20: #{net1_forward.1} parent=1 // pred_region
      %368 = dma.done [#allocation3], 128
    $region21: #{net1_forward.1} parent=1 // pred_fallthru
      _
    %369 = vsyncpa [#allocation3], 1

</llo_original>
